<compile_context>
chip_gen: v5e
topology: v5e:2x2
jax: 0.10.0
libtpu: 0.0.40
codegen_flags: <defaults>
</compile_context>

<pallas_src>
import math

import jax
import jax.numpy as jnp
from jax import lax
from jax.experimental import pallas as pl
from jax.experimental.pallas import tpu as pltpu

Z_SIZE = 32          # stand-in for args.z_size
HIDDEN = 1024
DROP_P = 0.2
# drop if u < floor(p * 2**32); differs from exact 0.2*2**32 by ~2e-10 (negligible)
DROP_THRESHOLD = int(DROP_P * (1 << 32))
TB_MAX = 512         # batch-tile rows; keeps the f32 hidden tile at 2 MiB so it
                     # fits comfortably inside v7x's 64 MiB VMEM with headroom.


def _round_up(n, m):
    return ((n + m - 1) // m) * m


def _fmix32(x):
    """murmur3 finalizer: uint32 -> well-mixed uint32 (VPU int ops only)."""
    x = x ^ (x >> 16)
    x = x * jnp.uint32(0x85EBCA6B)
    x = x ^ (x >> 13)
    x = x * jnp.uint32(0xC2B2AE35)
    x = x ^ (x >> 16)
    return x


def _emotion_regression_kernel(seed_ref, x_ref, w1_ref, b1_ref, w2_ref, b2_ref,
                               o_ref):
    i = pl.program_id(0)

    # ---- hidden_1: x @ W1 + b1, ReLU  (MXU, bf16 inputs / f32 accumulation) ----
    h = jnp.dot(x_ref[...].astype(jnp.bfloat16), w1_ref[...],
                preferred_element_type=jnp.float32)
    h = jnp.maximum(h + b1_ref[...], 0.0)                      # (TB, 1024) f32

    # ---- dropout(p=0.2, training=True) ----
    # Counter-based hash PRNG: hash(global element index + seed) -> uint32.
    # Portable (no pltpu.prng_*) and gives a distinct stream per batch tile.
    tb, hd = h.shape
    row = lax.broadcasted_iota(jnp.int32, (tb, hd), 0)
    col = lax.broadcasted_iota(jnp.int32, (tb, hd), 1)
    gidx = (i * tb + row) * hd + col + seed_ref[0]             # int32, wrap ok
    u = _fmix32(gidx.astype(jnp.uint32))
    keep = u >= jnp.uint32(DROP_THRESHOLD)                     # keep w.p. ~0.8
    # The 1/(1-p) scale is folded into w2, so dropout is a pure select here.
    h = jnp.where(keep, h, 0.0)

    # ---- hidden_2: (1024 -> 1) as VPU multiply + lane reduction ----
    # w2_ref is a lane-dense (1, 1024) row, pre-scaled by 1/(1-p).
    out = jnp.sum(h * w2_ref[...], axis=-1, keepdims=True)     # (TB, 1)
    o_ref[...] = out + b2_ref[0]


@jax.jit
def emotion_regression(x, w1_t, b1_row, w2_row, b2, seed):
    """Forward pass.

    x:       (B, Z)      f32
    w1_t:    (Z, 1024)   bf16  (transposed torch hidden_1.weight)
    b1_row:  (1, 1024)   f32
    w2_row:  (1, 1024)   f32   (hidden_2.weight row, pre-scaled by 1/(1-p))
    b2:      (1,)        f32
    seed:    (1,)        int32
    """
    b, z = x.shape
    tb = min(TB_MAX, _round_up(b, 8))
    b_pad = _round_up(b, tb)
    if b_pad != b:
        x = jnp.pad(x, ((0, b_pad - b), (0, 0)))
    grid = (b_pad // tb,)

    flops = 2 * b_pad * z * HIDDEN + 2 * b_pad * HIDDEN
    bytes_accessed = (b_pad * z * 4 + w1_t.size * 2
                      + (b1_row.size + w2_row.size + 1) * 4 + b_pad * 4)

    out = pl.pallas_call(
        _emotion_regression_kernel,
        grid=grid,
        out_shape=jax.ShapeDtypeStruct((b_pad, 1), jnp.float32),
        in_specs=[
            pl.BlockSpec(memory_space=pltpu.MemorySpace.SMEM),     # seed scalar
            pl.BlockSpec((tb, z), lambda i: (i, 0)),               # x tile
            pl.BlockSpec((z, HIDDEN), lambda i: (0, 0)),           # W1^T (resident)
            pl.BlockSpec((1, HIDDEN), lambda i: (0, 0)),           # b1 row
            pl.BlockSpec((1, HIDDEN), lambda i: (0, 0)),           # w2 row (scaled)
            pl.BlockSpec(memory_space=pltpu.MemorySpace.SMEM),     # b2 scalar
        ],
        out_specs=pl.BlockSpec((tb, 1), lambda i: (i, 0)),
        compiler_params=pltpu.CompilerParams(
            dimension_semantics=("parallel",),      # v7x megacore sharding
            vmem_limit_bytes=32 * 1024 * 1024,      # explicit, v7x-safe
        ),
        cost_estimate=pl.CostEstimate(
            flops=flops, transcendentals=0, bytes_accessed=bytes_accessed),
    )(seed, x, w1_t, b1_row, w2_row, b2)
    return out[:b]


def init_params(key):
    """Deterministic synthetic parameters matching nn.Linear shapes/init."""
    k1, k2, k3, k4 = jax.random.split(key, 4)
    lim1 = 1.0 / math.sqrt(Z_SIZE)
    lim2 = 1.0 / math.sqrt(HIDDEN)
    w1 = jax.random.uniform(k1, (HIDDEN, Z_SIZE), jnp.float32, -lim1, lim1)  # torch (out, in)
    b1 = jax.random.uniform(k2, (HIDDEN,), jnp.float32, -lim1, lim1)
    w2 = jax.random.uniform(k3, (1, HIDDEN), jnp.float32, -lim2, lim2)
    b2 = jax.random.uniform(k4, (1,), jnp.float32, -lim2, lim2)
    # Kernel layouts: W1 transposed to (in, out) in bf16 (MXU path), b1 as a
    # (1, 1024) row, w2 as a lane-dense (1, 1024) row with the dropout scale
    # 1/(1-p) folded in, b2 as an SMEM scalar.
    w1_t = w1.T.astype(jnp.bfloat16)
    b1_row = b1.reshape(1, HIDDEN)
    w2_row = (w2 * (1.0 / (1.0 - DROP_P))).astype(jnp.float32)
    return w1_t, b1_row, w2_row, b2


if __name__ == "__main__":
    key = jax.random.PRNGKey(0)
    k_x, k_p = jax.random.split(key)

    B = 8
    x = jax.random.normal(k_x, (B, Z_SIZE), jnp.float32)
    w1_t, b1_row, w2_row, b2 = init_params(k_p)
    seed = jnp.array([1234], dtype=jnp.int32)

    out = emotion_regression(x, w1_t, b1_row, w2_row, b2, seed)
    out = jax.block_until_ready(out)

    assert out.shape == (B, 1), out.shape
    assert out.dtype == jnp.float32, out.dtype
    assert bool(jnp.all(jnp.isfinite(out))), "non-finite output"
    print("KERNEL_OK")
</pallas_src>

<mosaic_0001>
module attributes {stable_mosaic.version = 11 : i64} {
  func.func @_emotion_regression_kernel(%arg0: i32, %arg1: memref<1xi32, #tpu.memory_space<smem>>, %arg2: memref<8x32xf32, #tpu.memory_space<vmem>>, %arg3: memref<32x1024xbf16, #tpu.memory_space<vmem>>, %arg4: memref<1x1024xf32, #tpu.memory_space<vmem>>, %arg5: memref<1x1024xf32, #tpu.memory_space<vmem>>, %arg6: memref<1xf32, #tpu.memory_space<smem>>, %arg7: memref<8x1xf32, #tpu.memory_space<vmem>>) attributes {dimension_semantics = [#tpu.dimension_semantics<parallel>], iteration_bounds = array<i64: 1>, scalar_prefetch = 0 : i64, scratch_operands = 0 : i64, tpu.core_type = #tpu.core_type<tc>, window_params = [{transform_indices = @transform_0, window_bounds = array<i64: 1>}, {transform_indices = @transform_1, window_bounds = array<i64: 8, 32>}, {pipeline_mode = #tpu.pipeline_mode<synchronous>, transform_indices = @transform_2, window_bounds = array<i64: 32, 1024>}, {pipeline_mode = #tpu.pipeline_mode<synchronous>, transform_indices = @transform_3, window_bounds = array<i64: 1, 1024>}, {pipeline_mode = #tpu.pipeline_mode<synchronous>, transform_indices = @transform_4, window_bounds = array<i64: 1, 1024>}, {transform_indices = @transform_5, window_bounds = array<i64: 1>}, {transform_indices = @transform_6, window_bounds = array<i64: 8, 1>}]} {
    %c0 = arith.constant 0 : index
    %c0_0 = arith.constant 0 : index
    %0 = vector.load %arg2[%c0, %c0_0] : memref<8x32xf32, #tpu.memory_space<vmem>>, vector<8x32xf32>
    %1 = arith.truncf %0 : vector<8x32xf32> to vector<8x32xbf16>
    %c0_1 = arith.constant 0 : index
    %c0_2 = arith.constant 0 : index
    %2 = vector.load %arg3[%c0_1, %c0_2] : memref<32x1024xbf16, #tpu.memory_space<vmem>>, vector<32x1024xbf16>
    %cst = arith.constant dense<0.000000e+00> : vector<8x1024xf32>
    %3 = tpu.matmul %1, %2, %cst {dimension_numbers = #tpu.dot_dimension_numbers<[1], [0], [0], [1], [0, 0, 1, 1], [], []>} : vector<8x32xbf16>, vector<32x1024xbf16>, vector<8x1024xf32> -> vector<8x1024xf32>
    %c0_3 = arith.constant 0 : index
    %c0_4 = arith.constant 0 : index
    %4 = vector.load %arg4[%c0_3, %c0_4] : memref<1x1024xf32, #tpu.memory_space<vmem>>, vector<1x1024xf32>
    %5 = vector.broadcast %4 : vector<1x1024xf32> to vector<8x1024xf32>
    %6 = arith.addf %3, %5 : vector<8x1024xf32>
    %cst_5 = arith.constant 0.000000e+00 : f32
    %7 = vector.broadcast %cst_5 : f32 to vector<8x1024xf32>
    %8 = arith.maximumf %6, %7 : vector<8x1024xf32>
    %9 = tpu.iota {dimensions = array<i32: 0>} : vector<8x1024xi32>
    %10 = tpu.iota {dimensions = array<i32: 1>} : vector<8x1024xi32>
    %c8_i32 = arith.constant 8 : i32
    %11 = arith.muli %arg0, %c8_i32 : i32
    %12 = vector.broadcast %11 : i32 to vector<8x1024xi32>
    %13 = arith.addi %12, %9 : vector<8x1024xi32>
    %c1024_i32 = arith.constant 1024 : i32
    %14 = vector.broadcast %c1024_i32 : i32 to vector<8x1024xi32>
    %15 = arith.muli %13, %14 : vector<8x1024xi32>
    %16 = arith.addi %15, %10 : vector<8x1024xi32>
    %c0_6 = arith.constant 0 : index
    %17 = memref.load %arg1[%c0_6] : memref<1xi32, #tpu.memory_space<smem>>
    %18 = vector.broadcast %17 : i32 to vector<8x1024xi32>
    %19 = arith.addi %16, %18 : vector<8x1024xi32>
    %c16_i32 = arith.constant 16 : i32
    %20 = vector.broadcast %c16_i32 : i32 to vector<8x1024xi32>
    %21 = arith.shrui %19, %20 : vector<8x1024xi32>
    %22 = arith.xori %19, %21 : vector<8x1024xi32>
    %c-2048144789_i32 = arith.constant -2048144789 : i32
    %23 = vector.broadcast %c-2048144789_i32 : i32 to vector<8x1024xi32>
    %24 = arith.muli %22, %23 : vector<8x1024xi32>
    %c13_i32 = arith.constant 13 : i32
    %25 = vector.broadcast %c13_i32 : i32 to vector<8x1024xi32>
    %26 = arith.shrui %24, %25 : vector<8x1024xi32>
    %27 = arith.xori %24, %26 : vector<8x1024xi32>
    %c-1028477387_i32 = arith.constant -1028477387 : i32
    %28 = vector.broadcast %c-1028477387_i32 : i32 to vector<8x1024xi32>
    %29 = arith.muli %27, %28 : vector<8x1024xi32>
    %c16_i32_7 = arith.constant 16 : i32
    %30 = vector.broadcast %c16_i32_7 : i32 to vector<8x1024xi32>
    %31 = arith.shrui %29, %30 : vector<8x1024xi32>
    %32 = arith.xori %29, %31 : vector<8x1024xi32>
    %c858993459_i32 = arith.constant 858993459 : i32
    %33 = vector.broadcast %c858993459_i32 : i32 to vector<8x1024xi32>
    %34 = arith.cmpi uge, %32, %33 : vector<8x1024xi32>
    %cst_8 = arith.constant 0.000000e+00 : f32
    %35 = vector.broadcast %cst_8 : f32 to vector<8x1024xf32>
    %36 = arith.select %34, %8, %35 : vector<8x1024xi1>, vector<8x1024xf32>
    %c0_9 = arith.constant 0 : index
    %c0_10 = arith.constant 0 : index
    %37 = vector.load %arg5[%c0_9, %c0_10] : memref<1x1024xf32, #tpu.memory_space<vmem>>, vector<1x1024xf32>
    %38 = vector.broadcast %37 : vector<1x1024xf32> to vector<8x1024xf32>
    %39 = arith.mulf %36, %38 : vector<8x1024xf32>
    %cst_11 = arith.constant dense<0.000000e+00> : vector<8xf32>
    %40 = vector.multi_reduction <add>, %39, %cst_11 [1] : vector<8x1024xf32> to vector<8xf32>
    %41 = vector.shape_cast %40 : vector<8xf32> to vector<8x1xf32>
    %c0_12 = arith.constant 0 : index
    %42 = memref.load %arg6[%c0_12] : memref<1xf32, #tpu.memory_space<smem>>
    %43 = vector.broadcast %42 : f32 to vector<8x1xf32>
    %44 = arith.addf %41, %43 : vector<8x1xf32>
    %c0_13 = arith.constant 0 : index
    %c0_14 = arith.constant 0 : index
    %45 = vector.load %arg7[%c0_13, %c0_14] : memref<8x1xf32, #tpu.memory_space<vmem>>, vector<8x1xf32>
    tpu.vector_store %arg7[%c0_13, %c0_14], %44 {strides = array<i32>} : memref<8x1xf32, #tpu.memory_space<vmem>>, vector<8x1xf32>,
    return
  }
  func.func @transform_0(%arg0: i32) -> i32 {
    %c0_i32 = arith.constant 0 : i32
    %c0_i32_0 = arith.constant 0 : i32
    return %c0_i32 : i32
  }
  func.func @transform_1(%arg0: i32) -> (i32, i32) {
    %c0_i32 = arith.constant 0 : i32
    %c0_i32_0 = arith.constant 0 : i32
    return %arg0, %c0_i32 : i32, i32
  }
  func.func @transform_2(%arg0: i32) -> (i32, i32) {
    %c0_i32 = arith.constant 0 : i32
    %c0_i32_0 = arith.constant 0 : i32
    %c0_i32_1 = arith.constant 0 : i32
    return %c0_i32, %c0_i32_0 : i32, i32
  }
  func.func @transform_3(%arg0: i32) -> (i32, i32) {
    %c0_i32 = arith.constant 0 : i32
    %c0_i32_0 = arith.constant 0 : i32
    %c0_i32_1 = arith.constant 0 : i32
    return %c0_i32, %c0_i32_0 : i32, i32
  }
  func.func @transform_4(%arg0: i32) -> (i32, i32) {
    %c0_i32 = arith.constant 0 : i32
    %c0_i32_0 = arith.constant 0 : i32
    %c0_i32_1 = arith.constant 0 : i32
    return %c0_i32, %c0_i32_0 : i32, i32
  }
  func.func @transform_5(%arg0: i32) -> i32 {
    %c0_i32 = arith.constant 0 : i32
    %c0_i32_0 = arith.constant 0 : i32
    return %c0_i32 : i32
  }
  func.func @transform_6(%arg0: i32) -> (i32, i32) {
    %c0_i32 = arith.constant 0 : i32
    %c0_i32_0 = arith.constant 0 : i32
    return %arg0, %c0_i32 : i32, i32
  }
}

</mosaic_0001>

<llo_original>
// kernel: emotion_regression.1
$region0: #{emotion_regression.1}
  #allocation0 [shape = 'u32[]', space=smem, size = 0x4, offset = 0x4, fixed_abs, tag = 'smem constant byte address 0x4 - core index']
  #allocation1 [shape = 'u32[72,128]{1,0:T(1,128)}', space=vmem, size = 0x9000, scoped, tag = 'internal scratch']
  #allocation2 [shape = 's32[1]{0:T(128)S(6)}', space=smem, size = 0x200, scoped, tag = 'scoped memory for emotion_regression.1']
  #allocation3 [shape = 'f32[1]{0:T(128)S(6)}', space=smem, size = 0x200, scoped, tag = 'scoped memory for emotion_regression.1']
  %s0 = inlined_call_operand.<no memory space> [shape: s32[1], index: 0, kind: input, shape index: {}]
  %s1 = inlined_call_operand.hbm [shape: f32[8,32], index: 1, kind: input, shape index: {}]
  %s2 = inlined_call_operand.hbm [shape: bf16[32,1024], index: 2, kind: input, shape index: {}]
  %s3 = inlined_call_operand.hbm [shape: f32[1,1024], index: 3, kind: input, shape index: {}]
  %s4 = inlined_call_operand.hbm [shape: f32[1,1024], index: 4, kind: input, shape index: {}]
  %s5 = inlined_call_operand.<no memory space> [shape: f32[1], index: 5, kind: input, shape index: {}]
  %s6 = inlined_call_operand.vmem [shape: f32[8,1], index: 6, kind: output, shape index: {}]
  %s7 = sld [smem:[#allocation0]]
  $region50: #{emotion_regression.1} parent=0
    _
  %s9 = ssub.s32 1, %s7
  %s10 = scalar_select 0, %s9, %s7
  %11 = sst [smem:[#allocation2]] %s0
  %12 = sst [smem:[#allocation3]] %s5
  $region1: #{emotion_regression.1} parent=0
    #allocation4 [shape = 'u8[4096]{0}', space=vmem, size = 0x1000, scoped, tag = 'input window, operand 1, single buffered']
    #allocation5 [shape = 's32[1]{0}', space=sflag, size = 0x4, scoped, tag = 'scoped memory for emotion_regression.1']
    #allocation6 [shape = 'u8[65536]{0}', space=vmem, size = 0x10000, scoped, tag = 'input window, operand 2, single buffered']
    #allocation7 [shape = 's32[1]{0}', space=sflag, size = 0x4, scoped, tag = 'scoped memory for emotion_regression.1']
    #allocation8 [shape = 'u8[4096]{0}', space=vmem, size = 0x1000, scoped, tag = 'input window, operand 3, single buffered']
    #allocation9 [shape = 'u8[4096]{0}', space=vmem, size = 0x1000, scoped, tag = 'input window, operand 4, single buffered']
    #allocation10 [shape = 's32[1]{0}', space=sflag, size = 0x4, scoped, tag = 'scoped memory for emotion_regression.1']
    %13 = vsyncpa [#allocation5], 0
    %14 = vsyncpa [#allocation7], 0
    %15 = vsyncpa [#allocation10], 0
    // Predicated region
    $region2: #{emotion_regression.1} parent=1 // pred_check
      _
    $region3: #{emotion_regression.1} parent=1 // pred_check_branch
      %17 = sbr.rel (0) target = $region5
    $region4: #{emotion_regression.1} parent=1 // pred_region
      _
    $region5: #{emotion_regression.1} parent=1 // pred_fallthru
      _
    // Predicated region
    $region6: #{emotion_regression.1} parent=1 // pred_check
      _
    $region7: #{emotion_regression.1} parent=1 // pred_check_branch
      %19 = sbr.rel (0) target = $region9
    $region8: #{emotion_regression.1} parent=1 // pred_region
      %21 = vsyncadd [#allocation5], 0
      %s23 = sshll.u32 %s1, 4
      %s24 = int_to_ptr.hbm [resolvable:$true] %s23
      %s25 = sshll.u32 [#allocation4], 4
      %s26 = int_to_ptr.vmem [resolvable:$true] %s25
      %28 = dma.hbm_to_vmem [thread:$0]  %s24, 128, %s26, [#allocation5]
    $region9: #{emotion_regression.1} parent=1 // pred_fallthru
      _
    // Predicated region
    $region10: #{emotion_regression.1} parent=1 // pred_check
      _
    $region11: #{emotion_regression.1} parent=1 // pred_check_branch
      %30 = sbr.rel (0) target = $region13
    $region12: #{emotion_regression.1} parent=1 // pred_region
      %32 = vsyncadd [#allocation7], 0
      %s33 = sshll.u32 %s2, 4
      %s34 = int_to_ptr.hbm [resolvable:$true] %s33
      %s35 = sshll.u32 [#allocation6], 4
      %s36 = int_to_ptr.vmem [resolvable:$true] %s35
      %41 = dma.hbm_to_vmem [thread:$0]  %s34, 2048, %s36, [#allocation7], 512, 512, 32
    $region13: #{emotion_regression.1} parent=1 // pred_fallthru
      _
    // Predicated region
    $region14: #{emotion_regression.1} parent=1 // pred_check
      _
    $region15: #{emotion_regression.1} parent=1 // pred_check_branch
      %43 = sbr.rel (0) target = $region17
    $region16: #{emotion_regression.1} parent=1 // pred_region
      %45 = vsyncadd [#allocation7], 0
      %s47 = sshll.u32 %s3, 4
      %s48 = int_to_ptr.hbm [resolvable:$true] %s47
      %s49 = sshll.u32 [#allocation8], 4
      %s50 = int_to_ptr.vmem [resolvable:$true] %s49
      %52 = dma.hbm_to_vmem [thread:$0]  %s48, 128, %s50, [#allocation7]
    $region17: #{emotion_regression.1} parent=1 // pred_fallthru
      _
    // Predicated region
    $region18: #{emotion_regression.1} parent=1 // pred_check
      _
    $region19: #{emotion_regression.1} parent=1 // pred_check_branch
      %54 = sbr.rel (0) target = $region21
    $region20: #{emotion_regression.1} parent=1 // pred_region
      %56 = vsyncadd [#allocation10], 0
      %s58 = sshll.u32 %s4, 4
      %s59 = int_to_ptr.hbm [resolvable:$true] %s58
      %s60 = sshll.u32 [#allocation9], 4
      %s61 = int_to_ptr.vmem [resolvable:$true] %s60
      %63 = dma.hbm_to_vmem [thread:$0]  %s59, 128, %s61, [#allocation10]
    $region21: #{emotion_regression.1} parent=1 // pred_fallthru
      _
    // Predicated region
    $region22: #{emotion_regression.1} parent=1 // pred_check
      _
    $region23: #{emotion_regression.1} parent=1 // pred_check_branch
      %65 = sbr.rel (0) target = $region25
    $region24: #{emotion_regression.1} parent=1 // pred_region
      _
    $region25: #{emotion_regression.1} parent=1 // pred_fallthru
      _
    // Predicated region
    $region26: #{emotion_regression.1} parent=1 // pred_check
      _
    $region27: #{emotion_regression.1} parent=1 // pred_check_branch
      %67 = sbr.rel (0) target = $region29
    $region28: #{emotion_regression.1} parent=1 // pred_region
      %69 = dma.done [#allocation5], 128
    $region29: #{emotion_regression.1} parent=1 // pred_fallthru
      _
    // Predicated region
    $region30: #{emotion_regression.1} parent=1 // pred_check
      _
    $region31: #{emotion_regression.1} parent=1 // pred_check_branch
      %71 = sbr.rel (0) target = $region33
    $region32: #{emotion_regression.1} parent=1 // pred_region
      %73 = dma.done [#allocation7], 2048
    $region33: #{emotion_regression.1} parent=1 // pred_fallthru
      _
    // Predicated region
    $region34: #{emotion_regression.1} parent=1 // pred_check
      _
    $region35: #{emotion_regression.1} parent=1 // pred_check_branch
      %75 = sbr.rel (0) target = $region37
    $region36: #{emotion_regression.1} parent=1 // pred_region
      %77 = dma.done [#allocation7], 128
    $region37: #{emotion_regression.1} parent=1 // pred_fallthru
      _
    // Predicated region
    $region38: #{emotion_regression.1} parent=1 // pred_check
      _
    $region39: #{emotion_regression.1} parent=1 // pred_check_branch
      %79 = sbr.rel (0) target = $region41
    $region40: #{emotion_regression.1} parent=1 // pred_region
      %81 = dma.done [#allocation10], 128
    $region41: #{emotion_regression.1} parent=1 // pred_fallthru
      _
    %v83 = vld [vmem:[#allocation4] sm:$0xff]
    %v84 = vpack.c.bf16 %v83, %v83
    %v85 = vld [vmem:[#allocation6] sm:$0xff]
    %v86 = vld [vmem:[#allocation6 + $0x8] sm:$0xff]
    %v87 = vld [vmem:[#allocation6 + $0x10] sm:$0xff]
    %v88 = vld [vmem:[#allocation6 + $0x18] sm:$0xff]
    %v89 = vld [vmem:[#allocation6 + $0x20] sm:$0xff]
    %v90 = vld [vmem:[#allocation6 + $0x28] sm:$0xff]
    %v91 = vld [vmem:[#allocation6 + $0x30] sm:$0xff]
    %v92 = vld [vmem:[#allocation6 + $0x38] sm:$0xff]
    %v93 = vld [vmem:[#allocation6 + $0x40] sm:$0xff]
    %v94 = vld [vmem:[#allocation6 + $0x48] sm:$0xff]
    %v95 = vld [vmem:[#allocation6 + $0x50] sm:$0xff]
    %v96 = vld [vmem:[#allocation6 + $0x58] sm:$0xff]
    %v97 = vld [vmem:[#allocation6 + $0x60] sm:$0xff]
    %v98 = vld [vmem:[#allocation6 + $0x68] sm:$0xff]
    %v99 = vld [vmem:[#allocation6 + $0x70] sm:$0xff]
    %v100 = vld [vmem:[#allocation6 + $0x78] sm:$0xff]
    %v101 = vld [vmem:[#allocation8] sm:$0xff]
    %v103 = vperm.slane %v101, 0
    %v104 = vperm.slane %v101, 1
    %v105 = vperm.slane %v101, 2
    %v106 = vperm.slane %v101, 3
    %v107 = vperm.slane %v101, 4
    %v108 = vperm.slane %v101, 5
    %v109 = vperm.slane %v101, 6
    %v110 = vperm.slane %v101, 7
    %v135 = vunpack.c.l.b16 %v85
    %v136 = vunpack.c.h.b16 %v85
    %v137 = vunpack.c.l.b16 %v86
    %v138 = vunpack.c.h.b16 %v86
    %v139 = vunpack.c.l.b16 %v87
    %v140 = vunpack.c.h.b16 %v87
    %v141 = vunpack.c.l.b16 %v88
    %v142 = vunpack.c.h.b16 %v88
    %v143 = vunpack.c.l.b16 %v89
    %v144 = vunpack.c.h.b16 %v89
    %v145 = vunpack.c.l.b16 %v90
    %v146 = vunpack.c.h.b16 %v90
    %v147 = vunpack.c.l.b16 %v91
    %v148 = vunpack.c.h.b16 %v91
    %v149 = vunpack.c.l.b16 %v92
    %v150 = vunpack.c.h.b16 %v92
    %v151 = vunpack.c.l.b16 %v93
    %v152 = vunpack.c.h.b16 %v93
    %v153 = vunpack.c.l.b16 %v94
    %v154 = vunpack.c.h.b16 %v94
    %v155 = vunpack.c.l.b16 %v95
    %v156 = vunpack.c.h.b16 %v95
    %v157 = vunpack.c.l.b16 %v96
    %v158 = vunpack.c.h.b16 %v96
    %v159 = vunpack.c.l.b16 %v97
    %v160 = vunpack.c.h.b16 %v97
    %v161 = vunpack.c.l.b16 %v98
    %v162 = vunpack.c.h.b16 %v98
    %v163 = vunpack.c.l.b16 %v99
    %v164 = vunpack.c.h.b16 %v99
    %v165 = vunpack.c.l.b16 %v100
    %v166 = vunpack.c.h.b16 %v100
    %v167 = vpack.c.b16 %v143, %v135
    %v168 = vpack.c.b16 %v144, %v136
    %v169 = vpack.c.b16 %v145, %v137
    %v170 = vpack.c.b16 %v146, %v138
    %v171 = vpack.c.b16 %v147, %v139
    %v172 = vpack.c.b16 %v148, %v140
    %v173 = vpack.c.b16 %v149, %v141
    %v174 = vpack.c.b16 %v150, %v142
    %v175 = vpack.c.b16 %v159, %v151
    %v176 = vpack.c.b16 %v160, %v152
    %v177 = vpack.c.b16 %v161, %v153
    %v178 = vpack.c.b16 %v162, %v154
    %v179 = vpack.c.b16 %v163, %v155
    %v180 = vpack.c.b16 %v164, %v156
    %v181 = vpack.c.b16 %v165, %v157
    %v182 = vpack.c.b16 %v166, %v158
    %vm199 = vcmask 261120
    %v201 = vsel %vm199, %v84, 0
    %203 = vmatpush.bf16.msra.mxu0 0
    %204 = vmatpush.bf16.msra.mxu0 0
    %205 = vmatpush.bf16.msra.mxu0 0
    %206 = vmatpush.bf16.msra.mxu0 0
    %207 = vmatpush.bf16.msra.mxu0 0
    %208 = vmatpush.bf16.msra.mxu0 0
    %209 = vmatpush.bf16.msra.mxu0 %v175
    %210 = vmatpush.bf16.msra.mxu0 %v167
    %211 = vmatmul.bf16.gmra.mxu0 %v201
    %v212 = vpop.f32.mrf.mxu0
    %v213 = vadd.f32 %v103, %v212
    %v214 = vpop.f32.mrf.mxu0
    %215 = vdwg.mxu0
    %216 = vmatpush.bf16.msra.mxu0 0
    %217 = vmatpush.bf16.msra.mxu0 0
    %218 = vmatpush.bf16.msra.mxu0 0
    %219 = vmatpush.bf16.msra.mxu0 0
    %220 = vmatpush.bf16.msra.mxu0 0
    %221 = vmatpush.bf16.msra.mxu0 0
    %222 = vmatpush.bf16.msra.mxu0 %v176
    %223 = vmatpush.bf16.msra.mxu0 %v168
    %224 = vmatmul.bf16.gmra.mxu0 %v201
    %v225 = vpop.f32.mrf.mxu0
    %v226 = vadd.f32 %v104, %v225
    %v227 = vpop.f32.mrf.mxu0
    %228 = vdwg.mxu0
    %229 = vmatpush.bf16.msra.mxu0 0
    %230 = vmatpush.bf16.msra.mxu0 0
    %231 = vmatpush.bf16.msra.mxu0 0
    %232 = vmatpush.bf16.msra.mxu0 0
    %233 = vmatpush.bf16.msra.mxu0 0
    %234 = vmatpush.bf16.msra.mxu0 0
    %235 = vmatpush.bf16.msra.mxu0 %v177
    %236 = vmatpush.bf16.msra.mxu0 %v169
    %237 = vmatmul.bf16.gmra.mxu0 %v201
    %v238 = vpop.f32.mrf.mxu0
    %v239 = vadd.f32 %v105, %v238
    %v240 = vpop.f32.mrf.mxu0
    %241 = vdwg.mxu0
    %242 = vmatpush.bf16.msra.mxu0 0
    %243 = vmatpush.bf16.msra.mxu0 0
    %244 = vmatpush.bf16.msra.mxu0 0
    %245 = vmatpush.bf16.msra.mxu0 0
    %246 = vmatpush.bf16.msra.mxu0 0
    %247 = vmatpush.bf16.msra.mxu0 0
    %248 = vmatpush.bf16.msra.mxu0 %v178
    %249 = vmatpush.bf16.msra.mxu0 %v170
    %250 = vmatmul.bf16.gmra.mxu0 %v201
    %v251 = vpop.f32.mrf.mxu0
    %v252 = vadd.f32 %v106, %v251
    %v253 = vpop.f32.mrf.mxu0
    %254 = vdwg.mxu0
    %255 = vmatpush.bf16.msra.mxu0 0
    %256 = vmatpush.bf16.msra.mxu0 0
    %257 = vmatpush.bf16.msra.mxu0 0
    %258 = vmatpush.bf16.msra.mxu0 0
    %259 = vmatpush.bf16.msra.mxu0 0
    %260 = vmatpush.bf16.msra.mxu0 0
    %261 = vmatpush.bf16.msra.mxu0 %v179
    %262 = vmatpush.bf16.msra.mxu0 %v171
    %263 = vmatmul.bf16.gmra.mxu0 %v201
    %v264 = vpop.f32.mrf.mxu0
    %v265 = vadd.f32 %v107, %v264
    %v266 = vpop.f32.mrf.mxu0
    %267 = vdwg.mxu0
    %268 = vmatpush.bf16.msra.mxu0 0
    %269 = vmatpush.bf16.msra.mxu0 0
    %270 = vmatpush.bf16.msra.mxu0 0
    %271 = vmatpush.bf16.msra.mxu0 0
    %272 = vmatpush.bf16.msra.mxu0 0
    %273 = vmatpush.bf16.msra.mxu0 0
    %274 = vmatpush.bf16.msra.mxu0 %v180
    %275 = vmatpush.bf16.msra.mxu0 %v172
    %276 = vmatmul.bf16.gmra.mxu0 %v201
    %v277 = vpop.f32.mrf.mxu0
    %v278 = vadd.f32 %v108, %v277
    %v279 = vpop.f32.mrf.mxu0
    %280 = vdwg.mxu0
    %281 = vmatpush.bf16.msra.mxu0 0
    %282 = vmatpush.bf16.msra.mxu0 0
    %283 = vmatpush.bf16.msra.mxu0 0
    %284 = vmatpush.bf16.msra.mxu0 0
    %285 = vmatpush.bf16.msra.mxu0 0
    %286 = vmatpush.bf16.msra.mxu0 0
    %287 = vmatpush.bf16.msra.mxu0 %v181
    %288 = vmatpush.bf16.msra.mxu0 %v173
    %289 = vmatmul.bf16.gmra.mxu0 %v201
    %v290 = vpop.f32.mrf.mxu0
    %v291 = vadd.f32 %v109, %v290
    %v292 = vpop.f32.mrf.mxu0
    %293 = vdwg.mxu0
    %294 = vmatpush.bf16.msra.mxu0 0
    %295 = vmatpush.bf16.msra.mxu0 0
    %296 = vmatpush.bf16.msra.mxu0 0
    %297 = vmatpush.bf16.msra.mxu0 0
    %298 = vmatpush.bf16.msra.mxu0 0
    %299 = vmatpush.bf16.msra.mxu0 0
    %300 = vmatpush.bf16.msra.mxu0 %v182
    %301 = vmatpush.bf16.msra.mxu0 %v174
    %302 = vmatmul.bf16.gmra.mxu0 %v201
    %v303 = vpop.f32.mrf.mxu0
    %v304 = vadd.f32 %v110, %v303
    %v305 = vpop.f32.mrf.mxu0
    %306 = vdwg.mxu0
    %v307 = vmax.f32 %v213, 0.0
    %v308 = vmax.f32 %v226, 0.0
    %v309 = vmax.f32 %v239, 0.0
    %v310 = vmax.f32 %v252, 0.0
    %v311 = vmax.f32 %v265, 0.0
    %v312 = vmax.f32 %v278, 0.0
    %v313 = vmax.f32 %v291, 0.0
    %v314 = vmax.f32 %v304, 0.0
    %v315 = vlaneseq
    %v316 = vshrl.u32 %v315, 7
    %v317 = vlaneseq
    %v318 = vand.u32 %v317, 127
    %v319 = vadd.s32 %v318, 128
    %v320 = vadd.s32 %v318, 256
    %v321 = vadd.s32 %v318, 384
    %v322 = vadd.s32 %v318, 512
    %v323 = vadd.s32 %v318, 640
    %v324 = vadd.s32 %v318, 768
    %v325 = vadd.s32 %v318, 896
    %s326 = smul.u32 0, 8
    %v327 = vstv %s326
    %v328 = vadd.s32 %v327, %v316
    %v329 = vmul.u32 %v328, 1024
    %v330 = vadd.s32 %v329, %v318
    %v331 = vadd.s32 %v329, %v319
    %v332 = vadd.s32 %v329, %v320
    %v333 = vadd.s32 %v329, %v321
    %v334 = vadd.s32 %v329, %v322
    %v335 = vadd.s32 %v329, %v323
    %v336 = vadd.s32 %v329, %v324
    %v337 = vadd.s32 %v329, %v325
    %s338 = sld [smem:[#allocation2]]
    %v339 = vstv %s338
    %v340 = vadd.s32 %v330, %v339
    %v341 = vadd.s32 %v331, %v339
    %v342 = vadd.s32 %v332, %v339
    %v343 = vadd.s32 %v333, %v339
    %v344 = vadd.s32 %v334, %v339
    %v345 = vadd.s32 %v335, %v339
    %v346 = vadd.s32 %v336, %v339
    %v347 = vadd.s32 %v337, %v339
    %v348 = vshrl.u32 %v340, 16
    %v349 = vshrl.u32 %v341, 16
    %v350 = vshrl.u32 %v342, 16
    %v351 = vshrl.u32 %v343, 16
    %v352 = vshrl.u32 %v344, 16
    %v353 = vshrl.u32 %v345, 16
    %v354 = vshrl.u32 %v346, 16
    %v355 = vshrl.u32 %v347, 16
    %v356 = vxor.u32 %v340, %v348
    %v357 = vxor.u32 %v341, %v349
    %v358 = vxor.u32 %v342, %v350
    %v359 = vxor.u32 %v343, %v351
    %v360 = vxor.u32 %v344, %v352
    %v361 = vxor.u32 %v345, %v353
    %v362 = vxor.u32 %v346, %v354
    %v363 = vxor.u32 %v347, %v355
    %v364 = vmul.u32 %v356, 2246822507
    %v365 = vmul.u32 %v357, 2246822507
    %v366 = vmul.u32 %v358, 2246822507
    %v367 = vmul.u32 %v359, 2246822507
    %v368 = vmul.u32 %v360, 2246822507
    %v369 = vmul.u32 %v361, 2246822507
    %v370 = vmul.u32 %v362, 2246822507
    %v371 = vmul.u32 %v363, 2246822507
    %v372 = vshrl.u32 %v364, 13
    %v373 = vshrl.u32 %v365, 13
    %v374 = vshrl.u32 %v366, 13
    %v375 = vshrl.u32 %v367, 13
    %v376 = vshrl.u32 %v368, 13
    %v377 = vshrl.u32 %v369, 13
    %v378 = vshrl.u32 %v370, 13
    %v379 = vshrl.u32 %v371, 13
    %v380 = vxor.u32 %v364, %v372
    %v381 = vxor.u32 %v365, %v373
    %v382 = vxor.u32 %v366, %v374
    %v383 = vxor.u32 %v367, %v375
    %v384 = vxor.u32 %v368, %v376
    %v385 = vxor.u32 %v369, %v377
    %v386 = vxor.u32 %v370, %v378
    %v387 = vxor.u32 %v371, %v379
    %v388 = vmul.u32 %v380, 3266489909
    %v389 = vmul.u32 %v381, 3266489909
    %v390 = vmul.u32 %v382, 3266489909
    %v391 = vmul.u32 %v383, 3266489909
    %v392 = vmul.u32 %v384, 3266489909
    %v393 = vmul.u32 %v385, 3266489909
    %v394 = vmul.u32 %v386, 3266489909
    %v395 = vmul.u32 %v387, 3266489909
    %v396 = vshrl.u32 %v388, 16
    %v397 = vshrl.u32 %v389, 16
    %v398 = vshrl.u32 %v390, 16
    %v399 = vshrl.u32 %v391, 16
    %v400 = vshrl.u32 %v392, 16
    %v401 = vshrl.u32 %v393, 16
    %v402 = vshrl.u32 %v394, 16
    %v403 = vshrl.u32 %v395, 16
    %v404 = vxor.u32 %v388, %v396
    %v405 = vxor.u32 %v389, %v397
    %v406 = vxor.u32 %v390, %v398
    %v407 = vxor.u32 %v391, %v399
    %v408 = vxor.u32 %v392, %v400
    %v409 = vxor.u32 %v393, %v401
    %v410 = vxor.u32 %v394, %v402
    %v411 = vxor.u32 %v395, %v403
    %v412 = vadd.s32 %v404, 2147483648
    %vm414 = vcmp.ge.s32.totalorder %v412, 3006477107
    %v415 = vadd.s32 %v405, 2147483648
    %vm417 = vcmp.ge.s32.totalorder %v415, 3006477107
    %v418 = vadd.s32 %v406, 2147483648
    %vm420 = vcmp.ge.s32.totalorder %v418, 3006477107
    %v421 = vadd.s32 %v407, 2147483648
    %vm423 = vcmp.ge.s32.totalorder %v421, 3006477107
    %v424 = vadd.s32 %v408, 2147483648
    %vm426 = vcmp.ge.s32.totalorder %v424, 3006477107
    %v427 = vadd.s32 %v409, 2147483648
    %vm429 = vcmp.ge.s32.totalorder %v427, 3006477107
    %v430 = vadd.s32 %v410, 2147483648
    %vm432 = vcmp.ge.s32.totalorder %v430, 3006477107
    %v433 = vadd.s32 %v411, 2147483648
    %vm435 = vcmp.ge.s32.totalorder %v433, 3006477107
    %v436 = vsel %vm414, %v307, 0.0
    %v437 = vsel %vm417, %v308, 0.0
    %v438 = vsel %vm420, %v309, 0.0
    %v439 = vsel %vm423, %v310, 0.0
    %v440 = vsel %vm426, %v311, 0.0
    %v441 = vsel %vm429, %v312, 0.0
    %v442 = vsel %vm432, %v313, 0.0
    %v443 = vsel %vm435, %v314, 0.0
    %v444 = vld [vmem:[#allocation9] sm:$0xff]
    %v446 = vperm.slane %v444, 0
    %v447 = vperm.slane %v444, 1
    %v448 = vperm.slane %v444, 2
    %v449 = vperm.slane %v444, 3
    %v450 = vperm.slane %v444, 4
    %v451 = vperm.slane %v444, 5
    %v452 = vperm.slane %v444, 6
    %v453 = vperm.slane %v444, 7
    %v462 = vmul.f32 %v436, %v446
    %v463 = vmul.f32 %v437, %v447
    %v464 = vmul.f32 %v438, %v448
    %v465 = vmul.f32 %v439, %v449
    %v466 = vmul.f32 %v440, %v450
    %v467 = vmul.f32 %v441, %v451
    %v468 = vmul.f32 %v442, %v452
    %v469 = vmul.f32 %v443, %v453
    %v470 = vadd.f32 %v462, %v463
    %v471 = vadd.f32 %v470, %v464
    %v472 = vadd.f32 %v471, %v465
    %v473 = vadd.f32 %v472, %v466
    %v474 = vadd.f32 %v473, %v467
    %v475 = vadd.f32 %v474, %v468
    %v476 = vadd.f32 %v475, %v469
    %477 = vadd.xlane.f32.xlu0 %v476
    %v478 = vpop.xlane.xlu0 %477
    %s479 = sld [smem:[#allocation3]]
    %v480 = vstv %s479
    %v481 = vadd.f32 %v478, %v480
    %vm482 = vcmask 7168
    %483 = vst.msk [vmem:[%s6] sm:$0xff] %vm482, %v481
    // Predicated region
    $region42: #{emotion_regression.1} parent=1 // pred_check
      _
    $region43: #{emotion_regression.1} parent=1 // pred_check_branch
      %485 = sbr.rel (0) target = $region45
    $region44: #{emotion_regression.1} parent=1 // pred_region
      _
    $region45: #{emotion_regression.1} parent=1 // pred_fallthru
      _
    // Predicated region
    $region46: #{emotion_regression.1} parent=1 // pred_check
      _
    $region47: #{emotion_regression.1} parent=1 // pred_check_branch
      %487 = sbr.rel (0) target = $region49
    $region48: #{emotion_regression.1} parent=1 // pred_region
      _
    $region49: #{emotion_regression.1} parent=1 // pred_fallthru
      _
    %488 = vsyncpa [#allocation5], 1
    %489 = vsyncpa [#allocation7], 1
    %490 = vsyncpa [#allocation10], 1

</llo_original>
